<compile_context>
chip_gen: v7x
topology: tpu7x:2x2x1
jax: 0.10.0
libtpu: 0.0.40
codegen_flags: <defaults>
</compile_context>

<pallas_src>
import jax
import jax.numpy as jnp
from jax.experimental import pallas as pl
from jax.experimental.pallas import tpu as pltpu


# ----------------------------- kernel -----------------------------

def model3_kernel(x_ref, w1_ref, w2_ref, w3_ref, hw1_ref, hw2_ref, bias_ref, out_ref):
    f32 = jnp.float32
    bf16 = jnp.bfloat16

    bias = bias_ref[...]                 # (8, 128) f32 slab, resident
    b1 = bias[0:1, :]                    # (1, 128)
    b2 = bias[1:2, :64]                  # (1, 64)   (BN1 folded)
    b3 = bias[2:3, :32]                  # (1, 32)   (BN2 folded)
    hb1 = bias[3:4, :64]                 # (1, 64)   fused head layer-1 bias
    hb2 = bias[4:5, :8]                  # (1, 8)    fused head layer-2 bias (+pad)
    age_mask = bias[5:6, :8]             # (1, 8)    1.0 in col 0 (age), 0 elsewhere

    # shared trunk: Linear->ReLU (BN folded into next Linear), Dropout = identity.
    # bf16 MXU operands, f32 accumulate, f32 elementwise.
    x = x_ref[...].astype(bf16)                                                  # (TM, 20)
    h = jnp.maximum(jnp.dot(x, w1_ref[...], preferred_element_type=f32) + b1, 0.0)
    h = jnp.maximum(jnp.dot(h.astype(bf16), w2_ref[...],
                            preferred_element_type=f32) + b2, 0.0)
    h = jnp.maximum(jnp.dot(h.astype(bf16), w3_ref[...],
                            preferred_element_type=f32) + b3, 0.0)               # (TM, 32)

    # fused heads: one (32,64) matmul + ReLU, one block-diagonal (64,8) matmul
    z = jnp.maximum(jnp.dot(h.astype(bf16), hw1_ref[...],
                            preferred_element_type=f32) + hb1, 0.0)              # (TM, 64)
    y = jnp.dot(z.astype(bf16), hw2_ref[...], preferred_element_type=f32) + hb2  # (TM, 8)

    # final ReLU applies ONLY to the age column (precomputed mask row, no iota)
    out_ref[...] = jnp.where(age_mask != 0.0, jnp.maximum(y, 0.0), y)


# ----------------------------- wrapper -----------------------------

def _round_up(n, m):
    return ((n + m - 1) // m) * m


def model3_forward(x, packed, tm=2048):
    """x: (B, 20) f32.  Returns (age (B,1), gender (B,2), handedness (B,2), class (B,2))."""
    w1, w2f, w3f, hw1, hw2, bias_slab = packed
    B, F = x.shape

    # batch tile: big enough to amortize per-step overhead, capped so that
    #   * tiny batches use a single small tile,
    #   * the grid has >=2 steps when B > 8 (v7x: 2 TensorCores share the parallel axis).
    TM = min(tm, _round_up(B, 8))
    TM = min(TM, max(8, _round_up(pl.cdiv(B, 2), 8)))

    grid = (pl.cdiv(B, TM),)   # ragged last block handled by Pallas partial-block clipping

    out = pl.pallas_call(
        model3_kernel,
        out_shape=jax.ShapeDtypeStruct((B, 8), jnp.float32),
        grid_spec=pltpu.PrefetchScalarGridSpec(
            num_scalar_prefetch=0,
            grid=grid,
            in_specs=[
                pl.BlockSpec((TM, F), lambda i: (i, 0)),      # x tile (pipelined, unpadded)
                pl.BlockSpec((F, 128), lambda i: (0, 0)),     # w1 (bf16, resident)
                pl.BlockSpec((128, 64), lambda i: (0, 0)),    # w2 (bf16, BN1 folded)
                pl.BlockSpec((64, 32), lambda i: (0, 0)),     # w3 (bf16, BN2 folded)
                pl.BlockSpec((32, 64), lambda i: (0, 0)),     # fused head layer 1 (bf16)
                pl.BlockSpec((64, 8), lambda i: (0, 0)),      # fused head layer 2 (bf16)
                pl.BlockSpec((8, 128), lambda i: (0, 0)),     # f32 bias + mask slab
            ],
            out_specs=pl.BlockSpec((TM, 8), lambda i: (i, 0)),
        ),
        compiler_params=pltpu.CompilerParams(
            dimension_semantics=("parallel",),
            vmem_limit_bytes=32 << 20,   # headroom for tm up to ~8K; safe on v5e/v6e/v7x
        ),
    )(x, w1, w2f, w3f, hw1, hw2, bias_slab)

    return out[:, 0:1], out[:, 1:3], out[:, 3:5], out[:, 5:7]


# ----------------------------- params -----------------------------

def _linear_params(key, fan_in, fan_out):
    """PyTorch nn.Linear default init (uniform +-1/sqrt(fan_in)); weight stored transposed."""
    kw, kb = jax.random.split(key)
    bound = 1.0 / jnp.sqrt(float(fan_in))
    w = jax.random.uniform(kw, (fan_in, fan_out), jnp.float32, -bound, bound)
    b = jax.random.uniform(kb, (1, fan_out), jnp.float32, -bound, bound)
    return w, b


def _bn_folded(num_features, eps=1e-5):
    """Eval-mode BatchNorm1d affine (default init) as scale/shift."""
    gamma = jnp.ones((1, num_features), jnp.float32)
    beta = jnp.zeros((1, num_features), jnp.float32)
    mean = jnp.zeros((1, num_features), jnp.float32)
    var = jnp.ones((1, num_features), jnp.float32)
    scale = gamma / jnp.sqrt(var + eps)
    shift = beta - mean * scale
    return scale, shift


def build_params(seed=0):
    """Raw (unfused) parameters, used by the pure-JAX reference."""
    key = jax.random.PRNGKey(seed)
    keys = jax.random.split(key, 11)

    w1, b1 = _linear_params(keys[0], 20, 128)
    s1, t1 = _bn_folded(128)
    w2, b2 = _linear_params(keys[1], 128, 64)
    s2, t2 = _bn_folded(64)
    w3, b3 = _linear_params(keys[2], 64, 32)

    wa1, ba1 = _linear_params(keys[3], 32, 16)
    wa2, ba2 = _linear_params(keys[4], 16, 1)
    wg1, bg1 = _linear_params(keys[5], 32, 16)
    wg2, bg2 = _linear_params(keys[6], 16, 2)
    whd1, bhd1 = _linear_params(keys[7], 32, 16)
    whd2, bhd2 = _linear_params(keys[8], 16, 2)
    wc1, bc1 = _linear_params(keys[9], 32, 16)
    wc2, bc2 = _linear_params(keys[10], 16, 2)

    return (w1, b1, s1, t1, w2, b2, s2, t2, w3, b3,
            wa1, ba1, wa2, ba2, wg1, bg1, wg2, bg2,
            whd1, bhd1, whd2, bhd2, wc1, bc1, wc2, bc2)


def pack_params(raw):
    """Fold BN into adjacent Linears (f32), fuse heads, cast weights to bf16, pack biases
    + the age-ReLU mask into one (8,128) f32 slab."""
    (w1, b1, s1, t1, w2, b2, s2, t2, w3, b3,
     wa1, ba1, wa2, ba2, wg1, bg1, wg2, bg2,
     whd1, bhd1, whd2, bhd2, wc1, bc1, wc2, bc2) = raw

    # fold eval-mode BN affine into the FOLLOWING Linear (exact, in f32):
    #   (relu(.)*s + t) @ W + b  ==  relu(.) @ (diag(s) @ W) + (t @ W + b)
    w2f = w2 * s1.reshape(-1, 1)
    b2f = b2 + t1 @ w2
    w3f = w3 * s2.reshape(-1, 1)
    b3f = b3 + t2 @ w3

    # fused head, layer 1: (32, 64) = [age | gender | handedness | class] hidden units
    head_w1 = jnp.concatenate([wa1, wg1, whd1, wc1], axis=1)        # (32, 64)
    head_b1 = jnp.concatenate([ba1, bg1, bhd1, bc1], axis=1)        # (1, 64)

    # fused head, layer 2: block-diagonal (64, 8); columns = [age(1)|gen(2)|hand(2)|cls(2)|pad]
    head_w2 = jnp.zeros((64, 8), jnp.float32)
    head_w2 = head_w2.at[0:16, 0:1].set(wa2)
    head_w2 = head_w2.at[16:32, 1:3].set(wg2)
    head_w2 = head_w2.at[32:48, 3:5].set(whd2)
    head_w2 = head_w2.at[48:64, 5:7].set(wc2)
    head_b2 = jnp.zeros((1, 8), jnp.float32)
    head_b2 = head_b2.at[:, 0:1].set(ba2)
    head_b2 = head_b2.at[:, 1:3].set(bg2)
    head_b2 = head_b2.at[:, 3:5].set(bhd2)
    head_b2 = head_b2.at[:, 5:7].set(bc2)

    # single (8,128) f32 bias slab: one bias vector per row; row 5 = age-ReLU column mask
    bias_slab = jnp.zeros((8, 128), jnp.float32)
    bias_slab = bias_slab.at[0, :128].set(b1[0])
    bias_slab = bias_slab.at[1, :64].set(b2f[0])
    bias_slab = bias_slab.at[2, :32].set(b3f[0])
    bias_slab = bias_slab.at[3, :64].set(head_b1[0])
    bias_slab = bias_slab.at[4, :8].set(head_b2[0])
    bias_slab = bias_slab.at[5, 0].set(1.0)   # age column gets the final ReLU

    bf16 = jnp.bfloat16
    return (w1.astype(bf16), w2f.astype(bf16), w3f.astype(bf16),
            head_w1.astype(bf16), head_w2.astype(bf16), bias_slab)


# ----------------------------- reference -----------------------------

def reference_forward(x, p):
    """Pure-JAX f32 reference using the ORIGINAL unfused parameters (eval-mode semantics)."""
    (w1, b1, s1, t1, w2, b2, s2, t2, w3, b3,
     wa1, ba1, wa2, ba2, wg1, bg1, wg2, bg2,
     whd1, bhd1, whd2, bhd2, wc1, bc1, wc2, bc2) = p
    hp = jax.lax.Precision.HIGHEST
    h = jnp.maximum(jnp.dot(x, w1, precision=hp) + b1, 0.0) * s1 + t1
    h = jnp.maximum(jnp.dot(h, w2, precision=hp) + b2, 0.0) * s2 + t2
    h = jnp.maximum(jnp.dot(h, w3, precision=hp) + b3, 0.0)

    def head(wa, ba, wb, bb):
        z = jnp.maximum(jnp.dot(h, wa, precision=hp) + ba, 0.0)
        return jnp.dot(z, wb, precision=hp) + bb

    return (jnp.maximum(head(wa1, ba1, wa2, ba2), 0.0),
            head(wg1, bg1, wg2, bg2),
            head(whd1, bhd1, whd2, bhd2),
            head(wc1, bc1, wc2, bc2))


# ----------------------------- demo -----------------------------

if __name__ == "__main__":
    raw = build_params(seed=0)
    packed = pack_params(raw)
    fwd = jax.jit(model3_forward)

    # kernel uses bf16 matmul operands (f32 accumulate); compare vs f32 reference with
    # a correspondingly relaxed tolerance.
    ATOL = RTOL = 3e-2

    # exact-tile batch
    x8 = jax.random.normal(jax.random.PRNGKey(0), (8, 20), jnp.float32)
    outs8 = fwd(x8, packed)
    jax.block_until_ready(outs8)
    ref8 = reference_forward(x8, raw)
    for got, exp in zip(outs8, ref8):
        assert got.shape == exp.shape, (got.shape, exp.shape)
        assert jnp.allclose(got, exp, atol=ATOL, rtol=RTOL), (got, exp)

    # ragged batch (exercises the partial last grid block / write clipping)
    x10 = jax.random.normal(jax.random.PRNGKey(1), (10, 20), jnp.float32)
    outs10 = fwd(x10, packed)
    jax.block_until_ready(outs10)
    ref10 = reference_forward(x10, raw)
    for got, exp in zip(outs10, ref10):
        assert got.shape == exp.shape, (got.shape, exp.shape)
        assert jnp.allclose(got, exp, atol=ATOL, rtol=RTOL), (got, exp)

    print("KERNEL_OK")
</pallas_src>

<mosaic_0001>
module attributes {stable_mosaic.version = 11 : i64} {
  func.func @model3_kernel(%arg0: i32, %arg1: memref<8x20xf32, #tpu.memory_space<vmem>>, %arg2: memref<20x128xbf16, #tpu.memory_space<vmem>>, %arg3: memref<128x64xbf16, #tpu.memory_space<vmem>>, %arg4: memref<64x32xbf16, #tpu.memory_space<vmem>>, %arg5: memref<32x64xbf16, #tpu.memory_space<vmem>>, %arg6: memref<64x8xbf16, #tpu.memory_space<vmem>>, %arg7: memref<8x128xf32, #tpu.memory_space<vmem>>, %arg8: memref<8x8xf32, #tpu.memory_space<vmem>>) attributes {dimension_semantics = [#tpu.dimension_semantics<parallel>], iteration_bounds = array<i64: 1>, scalar_prefetch = 0 : i64, scratch_operands = 0 : i64, tpu.core_type = #tpu.core_type<tc>, window_params = [{transform_indices = @transform_0, window_bounds = array<i64: 8, 20>}, {pipeline_mode = #tpu.pipeline_mode<synchronous>, transform_indices = @transform_1, window_bounds = array<i64: 20, 128>}, {pipeline_mode = #tpu.pipeline_mode<synchronous>, transform_indices = @transform_2, window_bounds = array<i64: 128, 64>}, {pipeline_mode = #tpu.pipeline_mode<synchronous>, transform_indices = @transform_3, window_bounds = array<i64: 64, 32>}, {pipeline_mode = #tpu.pipeline_mode<synchronous>, transform_indices = @transform_4, window_bounds = array<i64: 32, 64>}, {pipeline_mode = #tpu.pipeline_mode<synchronous>, transform_indices = @transform_5, window_bounds = array<i64: 64, 8>}, {pipeline_mode = #tpu.pipeline_mode<synchronous>, transform_indices = @transform_6, window_bounds = array<i64: 8, 128>}, {transform_indices = @transform_7, window_bounds = array<i64: 8, 8>}]} {
    %c0 = arith.constant 0 : index
    %c0_0 = arith.constant 0 : index
    %0 = vector.load %arg7[%c0, %c0_0] : memref<8x128xf32, #tpu.memory_space<vmem>>, vector<8x128xf32>
    %1 = vector.extract_strided_slice %0 {offsets = [0, 0], sizes = [1, 128], strides = [1, 1]} : vector<8x128xf32> to vector<1x128xf32>
    %2 = vector.extract_strided_slice %0 {offsets = [1, 0], sizes = [1, 64], strides = [1, 1]} : vector<8x128xf32> to vector<1x64xf32>
    %3 = vector.extract_strided_slice %0 {offsets = [2, 0], sizes = [1, 32], strides = [1, 1]} : vector<8x128xf32> to vector<1x32xf32>
    %4 = vector.extract_strided_slice %0 {offsets = [3, 0], sizes = [1, 64], strides = [1, 1]} : vector<8x128xf32> to vector<1x64xf32>
    %5 = vector.extract_strided_slice %0 {offsets = [4, 0], sizes = [1, 8], strides = [1, 1]} : vector<8x128xf32> to vector<1x8xf32>
    %6 = vector.extract_strided_slice %0 {offsets = [5, 0], sizes = [1, 8], strides = [1, 1]} : vector<8x128xf32> to vector<1x8xf32>
    %c0_1 = arith.constant 0 : index
    %c0_2 = arith.constant 0 : index
    %7 = vector.load %arg1[%c0_1, %c0_2] : memref<8x20xf32, #tpu.memory_space<vmem>>, vector<8x20xf32>
    %8 = arith.truncf %7 : vector<8x20xf32> to vector<8x20xbf16>
    %c0_3 = arith.constant 0 : index
    %c0_4 = arith.constant 0 : index
    %9 = vector.load %arg2[%c0_3, %c0_4] : memref<20x128xbf16, #tpu.memory_space<vmem>>, vector<20x128xbf16>
    %cst = arith.constant dense<0.000000e+00> : vector<8x128xf32>
    %10 = tpu.matmul %8, %9, %cst {dimension_numbers = #tpu.dot_dimension_numbers<[1], [0], [0], [1], [0, 0, 1, 1], [], []>} : vector<8x20xbf16>, vector<20x128xbf16>, vector<8x128xf32> -> vector<8x128xf32>
    %11 = vector.broadcast %1 : vector<1x128xf32> to vector<8x128xf32>
    %12 = arith.addf %10, %11 : vector<8x128xf32>
    %cst_5 = arith.constant 0.000000e+00 : f32
    %13 = vector.broadcast %cst_5 : f32 to vector<8x128xf32>
    %14 = arith.maximumf %12, %13 : vector<8x128xf32>
    %15 = arith.truncf %14 : vector<8x128xf32> to vector<8x128xbf16>
    %c0_6 = arith.constant 0 : index
    %c0_7 = arith.constant 0 : index
    %16 = vector.load %arg3[%c0_6, %c0_7] : memref<128x64xbf16, #tpu.memory_space<vmem>>, vector<128x64xbf16>
    %cst_8 = arith.constant dense<0.000000e+00> : vector<8x64xf32>
    %17 = tpu.matmul %15, %16, %cst_8 {dimension_numbers = #tpu.dot_dimension_numbers<[1], [0], [0], [1], [0, 0, 1, 1], [], []>} : vector<8x128xbf16>, vector<128x64xbf16>, vector<8x64xf32> -> vector<8x64xf32>
    %18 = vector.broadcast %2 : vector<1x64xf32> to vector<8x64xf32>
    %19 = arith.addf %17, %18 : vector<8x64xf32>
    %cst_9 = arith.constant 0.000000e+00 : f32
    %20 = vector.broadcast %cst_9 : f32 to vector<8x64xf32>
    %21 = arith.maximumf %19, %20 : vector<8x64xf32>
    %22 = arith.truncf %21 : vector<8x64xf32> to vector<8x64xbf16>
    %c0_10 = arith.constant 0 : index
    %c0_11 = arith.constant 0 : index
    %23 = vector.load %arg4[%c0_10, %c0_11] : memref<64x32xbf16, #tpu.memory_space<vmem>>, vector<64x32xbf16>
    %cst_12 = arith.constant dense<0.000000e+00> : vector<8x32xf32>
    %24 = tpu.matmul %22, %23, %cst_12 {dimension_numbers = #tpu.dot_dimension_numbers<[1], [0], [0], [1], [0, 0, 1, 1], [], []>} : vector<8x64xbf16>, vector<64x32xbf16>, vector<8x32xf32> -> vector<8x32xf32>
    %25 = vector.broadcast %3 : vector<1x32xf32> to vector<8x32xf32>
    %26 = arith.addf %24, %25 : vector<8x32xf32>
    %cst_13 = arith.constant 0.000000e+00 : f32
    %27 = vector.broadcast %cst_13 : f32 to vector<8x32xf32>
    %28 = arith.maximumf %26, %27 : vector<8x32xf32>
    %29 = arith.truncf %28 : vector<8x32xf32> to vector<8x32xbf16>
    %c0_14 = arith.constant 0 : index
    %c0_15 = arith.constant 0 : index
    %30 = vector.load %arg5[%c0_14, %c0_15] : memref<32x64xbf16, #tpu.memory_space<vmem>>, vector<32x64xbf16>
    %cst_16 = arith.constant dense<0.000000e+00> : vector<8x64xf32>
    %31 = tpu.matmul %29, %30, %cst_16 {dimension_numbers = #tpu.dot_dimension_numbers<[1], [0], [0], [1], [0, 0, 1, 1], [], []>} : vector<8x32xbf16>, vector<32x64xbf16>, vector<8x64xf32> -> vector<8x64xf32>
    %32 = vector.broadcast %4 : vector<1x64xf32> to vector<8x64xf32>
    %33 = arith.addf %31, %32 : vector<8x64xf32>
    %cst_17 = arith.constant 0.000000e+00 : f32
    %34 = vector.broadcast %cst_17 : f32 to vector<8x64xf32>
    %35 = arith.maximumf %33, %34 : vector<8x64xf32>
    %36 = arith.truncf %35 : vector<8x64xf32> to vector<8x64xbf16>
    %c0_18 = arith.constant 0 : index
    %c0_19 = arith.constant 0 : index
    %37 = vector.load %arg6[%c0_18, %c0_19] : memref<64x8xbf16, #tpu.memory_space<vmem>>, vector<64x8xbf16>
    %cst_20 = arith.constant dense<0.000000e+00> : vector<8x8xf32>
    %38 = tpu.matmul %36, %37, %cst_20 {dimension_numbers = #tpu.dot_dimension_numbers<[1], [0], [0], [1], [0, 0, 1, 1], [], []>} : vector<8x64xbf16>, vector<64x8xbf16>, vector<8x8xf32> -> vector<8x8xf32>
    %39 = vector.broadcast %5 : vector<1x8xf32> to vector<8x8xf32>
    %40 = arith.addf %38, %39 : vector<8x8xf32>
    %cst_21 = arith.constant 0.000000e+00 : f32
    %41 = vector.broadcast %cst_21 : f32 to vector<1x8xf32>
    %42 = arith.cmpf one, %6, %41 : vector<1x8xf32>
    %cst_22 = arith.constant 0.000000e+00 : f32
    %43 = vector.broadcast %cst_22 : f32 to vector<8x8xf32>
    %44 = arith.maximumf %40, %43 : vector<8x8xf32>
    %45 = vector.shape_cast %42 : vector<1x8xi1> to vector<1x8xi1>
    %46 = vector.broadcast %45 : vector<1x8xi1> to vector<8x8xi1>
    %47 = arith.select %46, %44, %40 : vector<8x8xi1>, vector<8x8xf32>
    %c0_23 = arith.constant 0 : index
    %c0_24 = arith.constant 0 : index
    %48 = vector.load %arg8[%c0_23, %c0_24] : memref<8x8xf32, #tpu.memory_space<vmem>>, vector<8x8xf32>
    tpu.vector_store %arg8[%c0_23, %c0_24], %47 {strides = array<i32>} : memref<8x8xf32, #tpu.memory_space<vmem>>, vector<8x8xf32>,
    return
  }
  func.func @transform_0(%arg0: i32) -> (i32, i32) {
    %c0_i32 = arith.constant 0 : i32
    %c0_i32_0 = arith.constant 0 : i32
    return %arg0, %c0_i32 : i32, i32
  }
  func.func @transform_1(%arg0: i32) -> (i32, i32) {
    %c0_i32 = arith.constant 0 : i32
    %c0_i32_0 = arith.constant 0 : i32
    %c0_i32_1 = arith.constant 0 : i32
    return %c0_i32, %c0_i32_0 : i32, i32
  }
  func.func @transform_2(%arg0: i32) -> (i32, i32) {
    %c0_i32 = arith.constant 0 : i32
    %c0_i32_0 = arith.constant 0 : i32
    %c0_i32_1 = arith.constant 0 : i32
    return %c0_i32, %c0_i32_0 : i32, i32
  }
  func.func @transform_3(%arg0: i32) -> (i32, i32) {
    %c0_i32 = arith.constant 0 : i32
    %c0_i32_0 = arith.constant 0 : i32
    %c0_i32_1 = arith.constant 0 : i32
    return %c0_i32, %c0_i32_0 : i32, i32
  }
  func.func @transform_4(%arg0: i32) -> (i32, i32) {
    %c0_i32 = arith.constant 0 : i32
    %c0_i32_0 = arith.constant 0 : i32
    %c0_i32_1 = arith.constant 0 : i32
    return %c0_i32, %c0_i32_0 : i32, i32
  }
  func.func @transform_5(%arg0: i32) -> (i32, i32) {
    %c0_i32 = arith.constant 0 : i32
    %c0_i32_0 = arith.constant 0 : i32
    %c0_i32_1 = arith.constant 0 : i32
    return %c0_i32, %c0_i32_0 : i32, i32
  }
  func.func @transform_6(%arg0: i32) -> (i32, i32) {
    %c0_i32 = arith.constant 0 : i32
    %c0_i32_0 = arith.constant 0 : i32
    %c0_i32_1 = arith.constant 0 : i32
    return %c0_i32, %c0_i32_0 : i32, i32
  }
  func.func @transform_7(%arg0: i32) -> (i32, i32) {
    %c0_i32 = arith.constant 0 : i32
    %c0_i32_0 = arith.constant 0 : i32
    return %arg0, %c0_i32 : i32, i32
  }
}

</mosaic_0001>

<llo_original>
// kernel: model3_forward.1
$region0: #{model3_forward.1}
  #allocation0 [shape = 'u32[]', space=smem, size = 0x4, offset = 0x4, fixed_abs, tag = 'smem constant byte address 0x4 - core index']
  #allocation1 [shape = 'u32[144,128]{1,0:T(1,128)}', space=vmem, size = 0x12000, scoped, tag = 'internal scratch']
  %s0 = inlined_call_operand.vmem [shape: f32[8,20], index: 0, kind: input, shape index: {}]
  %s1 = inlined_call_operand.vmem [shape: bf16[20,128], index: 1, kind: input, shape index: {}]
  %s2 = inlined_call_operand.vmem [shape: bf16[128,64], index: 2, kind: input, shape index: {}]
  %s3 = inlined_call_operand.vmem [shape: bf16[64,32], index: 3, kind: input, shape index: {}]
  %s4 = inlined_call_operand.vmem [shape: bf16[32,64], index: 4, kind: input, shape index: {}]
  %s5 = inlined_call_operand.vmem [shape: bf16[64,8], index: 5, kind: input, shape index: {}]
  %s6 = inlined_call_operand.vmem [shape: f32[8,128], index: 6, kind: input, shape index: {}]
  %s7 = inlined_call_operand.vmem [shape: f32[8,8], index: 7, kind: output, shape index: {}]
  %s8 = sld [smem:[#allocation0]]
  $region38: #{model3_forward.1} parent=0
    _
  %s10 = ssub.s32 1, %s8
  %s11 = scalar_select 0, %s10, %s8
  // Predicated region
  $region2: #{model3_forward.1} parent=0 // pred_check
    _
  $region3: #{model3_forward.1} parent=0 // pred_check_branch
    %13 = sbr.rel (0) target = $region5
  $region4: #{model3_forward.1} parent=0 // pred_region
    _
  $region5: #{model3_forward.1} parent=0 // pred_fallthru
    _
  // Predicated region
  $region6: #{model3_forward.1} parent=0 // pred_check
    _
  $region7: #{model3_forward.1} parent=0 // pred_check_branch
    %15 = sbr.rel (0) target = $region9
  $region8: #{model3_forward.1} parent=0 // pred_region
    _
  $region9: #{model3_forward.1} parent=0 // pred_fallthru
    _
  // Predicated region
  $region10: #{model3_forward.1} parent=0 // pred_check
    _
  $region11: #{model3_forward.1} parent=0 // pred_check_branch
    %17 = sbr.rel (0) target = $region13
  $region12: #{model3_forward.1} parent=0 // pred_region
    _
  $region13: #{model3_forward.1} parent=0 // pred_fallthru
    _
  // Predicated region
  $region14: #{model3_forward.1} parent=0 // pred_check
    _
  $region15: #{model3_forward.1} parent=0 // pred_check_branch
    %19 = sbr.rel (0) target = $region17
  $region16: #{model3_forward.1} parent=0 // pred_region
    _
  $region17: #{model3_forward.1} parent=0 // pred_fallthru
    _
  // Predicated region
  $region18: #{model3_forward.1} parent=0 // pred_check
    _
  $region19: #{model3_forward.1} parent=0 // pred_check_branch
    %21 = sbr.rel (0) target = $region21
  $region20: #{model3_forward.1} parent=0 // pred_region
    _
  $region21: #{model3_forward.1} parent=0 // pred_fallthru
    _
  // Predicated region
  $region22: #{model3_forward.1} parent=0 // pred_check
    _
  $region23: #{model3_forward.1} parent=0 // pred_check_branch
    %23 = sbr.rel (0) target = $region25
  $region24: #{model3_forward.1} parent=0 // pred_region
    _
  $region25: #{model3_forward.1} parent=0 // pred_fallthru
    _
  // Predicated region
  $region26: #{model3_forward.1} parent=0 // pred_check
    _
  $region27: #{model3_forward.1} parent=0 // pred_check_branch
    %25 = sbr.rel (0) target = $region29
  $region28: #{model3_forward.1} parent=0 // pred_region
    _
  $region29: #{model3_forward.1} parent=0 // pred_fallthru
    _
  %v27 = vld [vmem:[%s6] sm:$0xff]
  %v28 = vld [vmem:[%s0] sm:$0xff]
  %v29 = vpack.c.bf16 %v28, %v28
  %v30 = vld [vmem:[%s1] sm:$0xf]
  %v31 = vld [vmem:[%s1 + $0x4] sm:$0xf]
  %v32 = vld [vmem:[%s1 + $0x8] sm:$0x3]
  %v33 = vlaneseq
  %v34 = vshrl.u32 %v33, 7
  %v35 = vsub.s32 0, %v34
  %v36 = vrot.slane %v27, %v35
  %v40 = vunpack.c.l.b16 %v30
  %v41 = vunpack.c.l.b16 %v31
  %v42 = vunpack.c.l.b16 %v32
  %v43 = vpack.c.b16 %v41, %v40
  %v44 = vpack.c.b16 %v42, %v42
  %vm46 = vcmask 162816
  %v48 = vsel %vm46, %v29, 0
  %vm50 = vcmask 1041408
  %v52 = vsel %vm50, %v44, 0
  %54 = vmatprep.subr.bf16.mxu0 0
  %55 = vmatpush1.bf16.msra.mxu0 %v43
  %56 = vmatprep.subr.bf16.mxu0 0
  %57 = vmatpush1.bf16.msra.mxu0 %v52
  %58 = vmatprep.subr.bf16.mxu0 0
  %59 = vmatpush1.bf16.msra.mxu0 0
  %60 = vmatprep.subr.bf16.mxu0 0
  %61 = vmatpush1.bf16.msra.mxu0 0
  %62 = vmatprep.subr.bf16.mxu0 0
  %63 = vmatpush1.bf16.msra.mxu0 0
  %64 = vmatprep.subr.bf16.mxu0 0
  %65 = vmatpush1.bf16.msra.mxu0 0
  %66 = vmatprep.subr.bf16.mxu0 0
  %67 = vmatpush1.bf16.msra.mxu0 0
  %68 = vmatprep.subr.bf16.mxu0 0
  %69 = vmatpush1.bf16.msra.mxu0 0
  %70 = vmatprep.subr.bf16.mxu0 0
  %71 = vmatpush1.bf16.msra.mxu0 0
  %72 = vmatprep.subr.bf16.mxu0 0
  %73 = vmatpush1.bf16.msra.mxu0 0
  %74 = vmatprep.subr.bf16.mxu0 0
  %75 = vmatpush1.bf16.msra.mxu0 0
  %76 = vmatprep.subr.bf16.mxu0 0
  %77 = vmatpush1.bf16.msra.mxu0 0
  %78 = vmatprep.subr.bf16.mxu0 0
  %79 = vmatpush1.bf16.msra.mxu0 0
  %80 = vmatprep.subr.bf16.mxu0 0
  %81 = vmatpush1.bf16.msra.mxu0 0
  %82 = vmatprep.subr.bf16.mxu0 0
  %83 = vmatpush1.bf16.msra.mxu0 0
  %84 = vmatprep.subr.bf16.mxu0 0
  %85 = vmatpush1.bf16.msra.mxu0 0
  %86 = vmatprep.mubr.bf16.mxu0 0
  %87 = vmatmul.mubr.bf16.gmra.mrb[0].mxu0 %v48
  %v88 = vpop.f32.mrb[0].mxu0
  %v89 = vadd.f32 %v36, %v88
  %v90 = vpop.f32.mrb[0].mxu0
  %v91 = vpop.f32.mrb[0].mxu0
  %v92 = vpop.f32.mrb[0].mxu0
  %93 = vdwg.mxu0
  %v94 = vmax.f32 %v89, 0.0
  %v95 = vpack.c.bf16 %v94, %v94
  %v96 = vld [vmem:[%s2] sm:$0xf]
  %v97 = vld [vmem:[%s2 + $0x4] sm:$0xf]
  %v98 = vld [vmem:[%s2 + $0x8] sm:$0xf]
  %v99 = vld [vmem:[%s2 + $0xc] sm:$0xf]
  %v100 = vld [vmem:[%s2 + $0x10] sm:$0xf]
  %v101 = vld [vmem:[%s2 + $0x14] sm:$0xf]
  %v102 = vld [vmem:[%s2 + $0x18] sm:$0xf]
  %v103 = vld [vmem:[%s2 + $0x1c] sm:$0xf]
  %v104 = vld [vmem:[%s2 + $0x20] sm:$0xf]
  %v105 = vld [vmem:[%s2 + $0x24] sm:$0xf]
  %v106 = vld [vmem:[%s2 + $0x28] sm:$0xf]
  %v107 = vld [vmem:[%s2 + $0x2c] sm:$0xf]
  %v108 = vld [vmem:[%s2 + $0x30] sm:$0xf]
  %v109 = vld [vmem:[%s2 + $0x34] sm:$0xf]
  %v110 = vld [vmem:[%s2 + $0x38] sm:$0xf]
  %v111 = vld [vmem:[%s2 + $0x3c] sm:$0xf]
  %v112 = vlaneseq
  %v113 = vshrl.u32 %v112, 7
  %v114 = vsub.s32 1, %v113
  %v115 = vrot.slane %v27, %v114
  %v132 = vunpack.c.l.b16 %v96
  %v133 = vunpack.c.l.b16 %v97
  %v134 = vunpack.c.l.b16 %v98
  %v135 = vunpack.c.l.b16 %v99
  %v136 = vunpack.c.l.b16 %v100
  %v137 = vunpack.c.l.b16 %v101
  %v138 = vunpack.c.l.b16 %v102
  %v139 = vunpack.c.l.b16 %v103
  %v140 = vunpack.c.l.b16 %v104
  %v141 = vunpack.c.l.b16 %v105
  %v142 = vunpack.c.l.b16 %v106
  %v143 = vunpack.c.l.b16 %v107
  %v144 = vunpack.c.l.b16 %v108
  %v145 = vunpack.c.l.b16 %v109
  %v146 = vunpack.c.l.b16 %v110
  %v147 = vunpack.c.l.b16 %v111
  %v148 = vpack.c.b16 %v133, %v132
  %v149 = vpack.c.b16 %v135, %v134
  %v150 = vpack.c.b16 %v137, %v136
  %v151 = vpack.c.b16 %v139, %v138
  %v152 = vpack.c.b16 %v141, %v140
  %v153 = vpack.c.b16 %v143, %v142
  %v154 = vpack.c.b16 %v145, %v144
  %v155 = vpack.c.b16 %v147, %v146
  %164 = vmatprep.subr.bf16.mxu0 0
  %165 = vmatpush1.bf16.msra.mxu0 %v148
  %166 = vmatprep.subr.bf16.mxu0 0
  %167 = vmatpush1.bf16.msra.mxu0 %v149
  %168 = vmatprep.subr.bf16.mxu0 0
  %169 = vmatpush1.bf16.msra.mxu0 %v150
  %170 = vmatprep.subr.bf16.mxu0 0
  %171 = vmatpush1.bf16.msra.mxu0 %v151
  %172 = vmatprep.subr.bf16.mxu0 0
  %173 = vmatpush1.bf16.msra.mxu0 %v152
  %174 = vmatprep.subr.bf16.mxu0 0
  %175 = vmatpush1.bf16.msra.mxu0 %v153
  %176 = vmatprep.subr.bf16.mxu0 0
  %177 = vmatpush1.bf16.msra.mxu0 %v154
  %178 = vmatprep.subr.bf16.mxu0 0
  %179 = vmatpush1.bf16.msra.mxu0 %v155
  %180 = vmatprep.subr.bf16.mxu0 0
  %181 = vmatpush1.bf16.msra.mxu0 0
  %182 = vmatprep.subr.bf16.mxu0 0
  %183 = vmatpush1.bf16.msra.mxu0 0
  %184 = vmatprep.subr.bf16.mxu0 0
  %185 = vmatpush1.bf16.msra.mxu0 0
  %186 = vmatprep.subr.bf16.mxu0 0
  %187 = vmatpush1.bf16.msra.mxu0 0
  %188 = vmatprep.subr.bf16.mxu0 0
  %189 = vmatpush1.bf16.msra.mxu0 0
  %190 = vmatprep.subr.bf16.mxu0 0
  %191 = vmatpush1.bf16.msra.mxu0 0
  %192 = vmatprep.subr.bf16.mxu0 0
  %193 = vmatpush1.bf16.msra.mxu0 0
  %194 = vmatprep.subr.bf16.mxu0 0
  %195 = vmatpush1.bf16.msra.mxu0 0
  %196 = vmatprep.mubr.bf16.mxu0 0
  %197 = vmatmul.mubr.bf16.gmra.mrb[0].mxu0 %v95
  %v198 = vpop.f32.mrb[0].mxu0
  %v199 = vadd.f32 %v115, %v198
  %v200 = vpop.f32.mrb[0].mxu0
  %v201 = vpop.f32.mrb[0].mxu0
  %v202 = vpop.f32.mrb[0].mxu0
  %203 = vdwg.mxu0
  %v204 = vmax.f32 %v199, 0.0
  %v205 = vpack.c.bf16 %v204, %v204
  %v206 = vld [vmem:[%s3] sm:$0xf]
  %v207 = vld [vmem:[%s3 + $0x4] sm:$0xf]
  %v208 = vld [vmem:[%s3 + $0x8] sm:$0xf]
  %v209 = vld [vmem:[%s3 + $0xc] sm:$0xf]
  %v210 = vld [vmem:[%s3 + $0x10] sm:$0xf]
  %v211 = vld [vmem:[%s3 + $0x14] sm:$0xf]
  %v212 = vld [vmem:[%s3 + $0x18] sm:$0xf]
  %v213 = vld [vmem:[%s3 + $0x1c] sm:$0xf]
  %v214 = vlaneseq
  %v215 = vshrl.u32 %v214, 7
  %v216 = vsub.s32 2, %v215
  %v217 = vrot.slane %v27, %v216
  %v226 = vunpack.c.l.b16 %v206
  %v227 = vunpack.c.l.b16 %v207
  %v228 = vunpack.c.l.b16 %v208
  %v229 = vunpack.c.l.b16 %v209
  %v230 = vunpack.c.l.b16 %v210
  %v231 = vunpack.c.l.b16 %v211
  %v232 = vunpack.c.l.b16 %v212
  %v233 = vunpack.c.l.b16 %v213
  %v234 = vpack.c.b16 %v227, %v226
  %v235 = vpack.c.b16 %v229, %v228
  %v236 = vpack.c.b16 %v231, %v230
  %v237 = vpack.c.b16 %v233, %v232
  %vm242 = vcmask 523264
  %v244 = vsel %vm242, %v205, 0
  %246 = vmatprep.subr.bf16.mxu0 0
  %247 = vmatpush1.bf16.msra.mxu0 %v234
  %248 = vmatprep.subr.bf16.mxu0 0
  %249 = vmatpush1.bf16.msra.mxu0 %v235
  %250 = vmatprep.subr.bf16.mxu0 0
  %251 = vmatpush1.bf16.msra.mxu0 %v236
  %252 = vmatprep.subr.bf16.mxu0 0
  %253 = vmatpush1.bf16.msra.mxu0 %v237
  %254 = vmatprep.subr.bf16.mxu0 0
  %255 = vmatpush1.bf16.msra.mxu0 0
  %256 = vmatprep.subr.bf16.mxu0 0
  %257 = vmatpush1.bf16.msra.mxu0 0
  %258 = vmatprep.subr.bf16.mxu0 0
  %259 = vmatpush1.bf16.msra.mxu0 0
  %260 = vmatprep.subr.bf16.mxu0 0
  %261 = vmatpush1.bf16.msra.mxu0 0
  %262 = vmatprep.subr.bf16.mxu0 0
  %263 = vmatpush1.bf16.msra.mxu0 0
  %264 = vmatprep.subr.bf16.mxu0 0
  %265 = vmatpush1.bf16.msra.mxu0 0
  %266 = vmatprep.subr.bf16.mxu0 0
  %267 = vmatpush1.bf16.msra.mxu0 0
  %268 = vmatprep.subr.bf16.mxu0 0
  %269 = vmatpush1.bf16.msra.mxu0 0
  %270 = vmatprep.subr.bf16.mxu0 0
  %271 = vmatpush1.bf16.msra.mxu0 0
  %272 = vmatprep.subr.bf16.mxu0 0
  %273 = vmatpush1.bf16.msra.mxu0 0
  %274 = vmatprep.subr.bf16.mxu0 0
  %275 = vmatpush1.bf16.msra.mxu0 0
  %276 = vmatprep.subr.bf16.mxu0 0
  %277 = vmatpush1.bf16.msra.mxu0 0
  %278 = vmatprep.mubr.bf16.mxu0 0
  %279 = vmatmul.mubr.bf16.gmra.mrb[0].mxu0 %v244
  %v280 = vpop.f32.mrb[0].mxu0
  %v281 = vadd.f32 %v217, %v280
  %v282 = vpop.f32.mrb[0].mxu0
  %v283 = vpop.f32.mrb[0].mxu0
  %v284 = vpop.f32.mrb[0].mxu0
  %285 = vdwg.mxu0
  %v286 = vmax.f32 %v281, 0.0
  %v287 = vpack.c.bf16 %v286, %v286
  %v288 = vld [vmem:[%s4] sm:$0xf]
  %v289 = vld [vmem:[%s4 + $0x4] sm:$0xf]
  %v290 = vld [vmem:[%s4 + $0x8] sm:$0xf]
  %v291 = vld [vmem:[%s4 + $0xc] sm:$0xf]
  %v292 = vlaneseq
  %v293 = vshrl.u32 %v292, 7
  %v294 = vsub.s32 3, %v293
  %v295 = vrot.slane %v27, %v294
  %v300 = vunpack.c.l.b16 %v288
  %v301 = vunpack.c.l.b16 %v289
  %v302 = vunpack.c.l.b16 %v290
  %v303 = vunpack.c.l.b16 %v291
  %v304 = vpack.c.b16 %v301, %v300
  %v305 = vpack.c.b16 %v303, %v302
  %vm308 = vcmask 261120
  %v310 = vsel %vm308, %v287, 0
  %312 = vmatprep.subr.bf16.mxu0 0
  %313 = vmatpush1.bf16.msra.mxu0 %v304
  %314 = vmatprep.subr.bf16.mxu0 0
  %315 = vmatpush1.bf16.msra.mxu0 %v305
  %316 = vmatprep.subr.bf16.mxu0 0
  %317 = vmatpush1.bf16.msra.mxu0 0
  %318 = vmatprep.subr.bf16.mxu0 0
  %319 = vmatpush1.bf16.msra.mxu0 0
  %320 = vmatprep.subr.bf16.mxu0 0
  %321 = vmatpush1.bf16.msra.mxu0 0
  %322 = vmatprep.subr.bf16.mxu0 0
  %323 = vmatpush1.bf16.msra.mxu0 0
  %324 = vmatprep.subr.bf16.mxu0 0
  %325 = vmatpush1.bf16.msra.mxu0 0
  %326 = vmatprep.subr.bf16.mxu0 0
  %327 = vmatpush1.bf16.msra.mxu0 0
  %328 = vmatprep.subr.bf16.mxu0 0
  %329 = vmatpush1.bf16.msra.mxu0 0
  %330 = vmatprep.subr.bf16.mxu0 0
  %331 = vmatpush1.bf16.msra.mxu0 0
  %332 = vmatprep.subr.bf16.mxu0 0
  %333 = vmatpush1.bf16.msra.mxu0 0
  %334 = vmatprep.subr.bf16.mxu0 0
  %335 = vmatpush1.bf16.msra.mxu0 0
  %336 = vmatprep.subr.bf16.mxu0 0
  %337 = vmatpush1.bf16.msra.mxu0 0
  %338 = vmatprep.subr.bf16.mxu0 0
  %339 = vmatpush1.bf16.msra.mxu0 0
  %340 = vmatprep.subr.bf16.mxu0 0
  %341 = vmatpush1.bf16.msra.mxu0 0
  %342 = vmatprep.subr.bf16.mxu0 0
  %343 = vmatpush1.bf16.msra.mxu0 0
  %344 = vmatprep.mubr.bf16.mxu0 0
  %345 = vmatmul.mubr.bf16.gmra.mrb[0].mxu0 %v310
  %v346 = vpop.f32.mrb[0].mxu0
  %v347 = vadd.f32 %v295, %v346
  %v348 = vpop.f32.mrb[0].mxu0
  %v349 = vpop.f32.mrb[0].mxu0
  %v350 = vpop.f32.mrb[0].mxu0
  %351 = vdwg.mxu0
  %v352 = vmax.f32 %v347, 0.0
  %v353 = vpack.c.bf16 %v352, %v352
  %v354 = vld [vmem:[%s5] sm:$0xf]
  %v355 = vld [vmem:[%s5 + $0x4] sm:$0xf]
  %v356 = vld [vmem:[%s5 + $0x8] sm:$0xf]
  %v357 = vld [vmem:[%s5 + $0xc] sm:$0xf]
  %v358 = vld [vmem:[%s5 + $0x10] sm:$0xf]
  %v359 = vld [vmem:[%s5 + $0x14] sm:$0xf]
  %v360 = vld [vmem:[%s5 + $0x18] sm:$0xf]
  %v361 = vld [vmem:[%s5 + $0x1c] sm:$0xf]
  %v362 = vlaneseq
  %v363 = vshrl.u32 %v362, 7
  %v364 = vsub.s32 4, %v363
  %v365 = vrot.slane %v27, %v364
  %v374 = vunpack.c.l.b16 %v354
  %v375 = vunpack.c.l.b16 %v355
  %v376 = vunpack.c.l.b16 %v356
  %v377 = vunpack.c.l.b16 %v357
  %v378 = vunpack.c.l.b16 %v358
  %v379 = vunpack.c.l.b16 %v359
  %v380 = vunpack.c.l.b16 %v360
  %v381 = vunpack.c.l.b16 %v361
  %v382 = vpack.c.b16 %v375, %v374
  %v383 = vpack.c.b16 %v377, %v376
  %v384 = vpack.c.b16 %v379, %v378
  %v385 = vpack.c.b16 %v381, %v380
  %v391 = vsel %vm242, %v353, 0
  %393 = vmatprep.subr.bf16.mxu0 0
  %394 = vmatpush1.bf16.msra.mxu0 %v382
  %395 = vmatprep.subr.bf16.mxu0 0
  %396 = vmatpush1.bf16.msra.mxu0 %v383
  %397 = vmatprep.subr.bf16.mxu0 0
  %398 = vmatpush1.bf16.msra.mxu0 %v384
  %399 = vmatprep.subr.bf16.mxu0 0
  %400 = vmatpush1.bf16.msra.mxu0 %v385
  %401 = vmatprep.subr.bf16.mxu0 0
  %402 = vmatpush1.bf16.msra.mxu0 0
  %403 = vmatprep.subr.bf16.mxu0 0
  %404 = vmatpush1.bf16.msra.mxu0 0
  %405 = vmatprep.subr.bf16.mxu0 0
  %406 = vmatpush1.bf16.msra.mxu0 0
  %407 = vmatprep.subr.bf16.mxu0 0
  %408 = vmatpush1.bf16.msra.mxu0 0
  %409 = vmatprep.subr.bf16.mxu0 0
  %410 = vmatpush1.bf16.msra.mxu0 0
  %411 = vmatprep.subr.bf16.mxu0 0
  %412 = vmatpush1.bf16.msra.mxu0 0
  %413 = vmatprep.subr.bf16.mxu0 0
  %414 = vmatpush1.bf16.msra.mxu0 0
  %415 = vmatprep.subr.bf16.mxu0 0
  %416 = vmatpush1.bf16.msra.mxu0 0
  %417 = vmatprep.subr.bf16.mxu0 0
  %418 = vmatpush1.bf16.msra.mxu0 0
  %419 = vmatprep.subr.bf16.mxu0 0
  %420 = vmatpush1.bf16.msra.mxu0 0
  %421 = vmatprep.subr.bf16.mxu0 0
  %422 = vmatpush1.bf16.msra.mxu0 0
  %423 = vmatprep.subr.bf16.mxu0 0
  %424 = vmatpush1.bf16.msra.mxu0 0
  %425 = vmatprep.mubr.bf16.mxu0 0
  %426 = vmatmul.mubr.bf16.gmra.mrb[0].mxu0 %v391
  %v427 = vpop.f32.mrb[0].mxu0
  %v428 = vadd.f32 %v365, %v427
  %v429 = vpop.f32.mrb[0].mxu0
  %v430 = vpop.f32.mrb[0].mxu0
  %v431 = vpop.f32.mrb[0].mxu0
  %432 = vdwg.mxu0
  %vm433 = vcmp.ne.f32.partialorder %v27, 0.0
  %v434 = vmax.f32 %v428, 0.0
  %v435 = vsel %vm433, 1, 0
  %v436 = vlaneseq
  %v437 = vshrl.u32 %v436, 7
  %v438 = vsub.s32 5, %v437
  %v439 = vrot.slane %v435, %v438
  %vm440 = vcmp.eq.s32.totalorder %v439, 1
  %v441 = vsel %vm440, %v434, %v428
  %vm442 = vcmask 64512
  %443 = vst.msk [vmem:[%s7] sm:$0xff] %vm442, %v441
  // Predicated region
  $region30: #{model3_forward.1} parent=0 // pred_check
    _
  $region31: #{model3_forward.1} parent=0 // pred_check_branch
    %445 = sbr.rel (0) target = $region33
  $region32: #{model3_forward.1} parent=0 // pred_region
    _
  $region33: #{model3_forward.1} parent=0 // pred_fallthru
    _
  // Predicated region
  $region34: #{model3_forward.1} parent=0 // pred_check
    _
  $region35: #{model3_forward.1} parent=0 // pred_check_branch
    %447 = sbr.rel (0) target = $region37
  $region36: #{model3_forward.1} parent=0 // pred_region
    _
  $region37: #{model3_forward.1} parent=0 // pred_fallthru
    _

</llo_original>
